<compile_context>
chip_gen: v5e
topology: v5e:2x2
jax: 0.10.0
libtpu: 0.0.40
codegen_flags: <defaults>
</compile_context>

<pallas_src>
import jax
import jax.numpy as jnp
from jax.experimental import pallas as pl
from jax.experimental.pallas import tpu as pltpu

NEG_SLOPE = 0.01
BN_EPS = 1e-5
LANE = 128      # lane width: hidden dims padded to multiples of this
SUBLANE = 8     # sublane width: batch tile is a multiple of this


def _round_up(v, m):
    return (v + m - 1) // m * m


def _leaky_relu(x):
    return jnp.where(x > 0, x, NEG_SLOPE * x)


# --------------------------------------------------------------------------- #
# Kernel: three fused dot + bias (+ leaky_relu) stages on one batch tile.
# BN affines and dropout (eval identity) are already folded into W/b.
# bf16 operands into the MXU, f32 accumulation.
# --------------------------------------------------------------------------- #
def mlp_kernel(x_ref, w1_ref, b1_ref, w2_ref, b2_ref, w3_ref, b3_ref, o_ref):
    h = x_ref[...].astype(jnp.bfloat16)
    h = _leaky_relu(
        jnp.dot(h, w1_ref[...], preferred_element_type=jnp.float32) + b1_ref[...])
    h = _leaky_relu(
        jnp.dot(h.astype(jnp.bfloat16), w2_ref[...],
                preferred_element_type=jnp.float32) + b2_ref[...])
    o_ref[...] = (
        jnp.dot(h.astype(jnp.bfloat16), w3_ref[...],
                preferred_element_type=jnp.float32) + b3_ref[...]
    ).astype(o_ref.dtype)


# --------------------------------------------------------------------------- #
# Wrapper: batch-tiled pallas_call with resident weights (constant index_map).
# --------------------------------------------------------------------------- #
def model_old_forward(x, params, *, block_rows=1024):
    n, f = x.shape
    w1, b1 = params["w1"], params["b1"]    # [F, H_pad] bf16, [1, H_pad] f32
    w2, b2 = params["w2"], params["b2"]    # [H_pad, H_pad] bf16, [1, H_pad] f32
    w3, b3 = params["w3"], params["b3"]    # [H_pad, T] bf16, [1, T] f32
    h_pad = w1.shape[1]
    t = w3.shape[1]

    # ---- Tile / grid selection: minimize batch padding, and give v7x's two
    #      TensorCores >= 2 grid steps for mid-sized batches.
    n_tiles = max(1, -(-n // block_rows))
    if n_tiles < 2 and n > SUBLANE:
        n_tiles = 2
    tb = max(SUBLANE, _round_up(-(-n // n_tiles), SUBLANE))
    n_pad = _round_up(n, tb)

    # ---- VMEM guard (v7x has 64 MiB physical): double-buffered x/out tiles
    #      plus (double-buffered) resident weights must fit comfortably.
    weight_bytes = ((w1.size + w2.size + w3.size) * 2
                    + (b1.size + b2.size + b3.size) * 4)

    def io_bytes(rows):
        # x tile (f32) + out tile (f32) + rough f32/bf16 intermediates.
        return rows * (f * 4 + t * 4 + h_pad * 6)

    budget = 48 * 1024 * 1024
    while tb > SUBLANE and 2 * (io_bytes(tb) + weight_bytes) > budget:
        tb = max(SUBLANE, _round_up(tb // 2, SUBLANE))
        n_pad = _round_up(n, tb)
    # TODO(synk): for very large hidden_size where the weights alone exceed the
    # VMEM budget, a K/N-tiled grid with an accumulator (pattern P3) is needed.

    grid = (n_pad // tb,)
    vmem_limit = int(min(budget,
                         max(8 * 1024 * 1024,
                             2 * (io_bytes(tb) + weight_bytes) + (4 << 20))))

    x = x.astype(jnp.float32)
    if n_pad != n:
        x = jnp.pad(x, ((0, n_pad - n), (0, 0)))   # pad batch rows only

    flops = 2 * n_pad * (f * h_pad + h_pad * h_pad + h_pad * t)
    bytes_accessed = n_pad * (f + t) * 4 + weight_bytes
    cost = pl.CostEstimate(flops=flops, transcendentals=0,
                           bytes_accessed=bytes_accessed)

    out = pl.pallas_call(
        mlp_kernel,
        out_shape=jax.ShapeDtypeStruct((n_pad, t), jnp.float32),
        grid=grid,
        in_specs=[
            pl.BlockSpec((tb, f), lambda i: (i, 0)),   # x tile (unpadded F)
            pl.BlockSpec(w1.shape, lambda i: (0, 0)),  # resident W1
            pl.BlockSpec(b1.shape, lambda i: (0, 0)),  # resident b1
            pl.BlockSpec(w2.shape, lambda i: (0, 0)),  # resident W2
            pl.BlockSpec(b2.shape, lambda i: (0, 0)),  # resident b2
            pl.BlockSpec(w3.shape, lambda i: (0, 0)),  # resident W3
            pl.BlockSpec(b3.shape, lambda i: (0, 0)),  # resident b3
        ],
        out_specs=pl.BlockSpec((tb, t), lambda i: (i, 0)),   # true-width output
        compiler_params=pltpu.CompilerParams(
            dimension_semantics=("parallel",),
            vmem_limit_bytes=vmem_limit,
        ),
        cost_estimate=cost,
    )(x, w1, b1, w2, b2, w3, b3)

    return out if n_pad == n else out[:n]


# --------------------------------------------------------------------------- #
# Parameter construction (PyTorch-equivalent init), BN folding, padding.
# --------------------------------------------------------------------------- #
def _weight_norm_linear_params(key, in_features, out_features):
    """Deterministic init matching nn.Linear + weight_norm (dim=0)."""
    kw, kb = jax.random.split(key)
    bound = 1.0 / jnp.sqrt(jnp.float32(in_features))
    v = jax.random.uniform(kw, (out_features, in_features), jnp.float32,
                           minval=-bound, maxval=bound)
    b = jax.random.uniform(kb, (out_features,), jnp.float32,
                           minval=-bound, maxval=bound)
    # weight_norm init: g = ||v||_row  =>  effective W = g * v / ||v|| = v
    norm = jnp.maximum(jnp.sqrt(jnp.sum(v * v, axis=1, keepdims=True)), 1e-12)
    g = jnp.sqrt(jnp.sum(v * v, axis=1, keepdims=True))
    w_eff = g * v / norm
    return w_eff.T.astype(jnp.float32), b.reshape(1, out_features)  # [in,out], [1,out]


def _bn_affine(num_feat):
    """Eval-mode BatchNorm1d at init: gamma=1, beta=0, mean=0, var=1."""
    gamma = jnp.ones((num_feat,), jnp.float32)
    beta = jnp.zeros((num_feat,), jnp.float32)
    mean = jnp.zeros((num_feat,), jnp.float32)
    var = jnp.ones((num_feat,), jnp.float32)
    scale = gamma / jnp.sqrt(var + BN_EPS)
    shift = beta - mean * scale
    return scale.reshape(1, num_feat), shift.reshape(1, num_feat)


def _fold_bn(scale, shift, w_t, b):
    """(x*s + t) @ W + b  ==  x @ (diag(s)@W) + (t@W + b)."""
    w_f = scale.reshape(-1, 1) * w_t
    b_f = shift @ w_t + b
    return w_f, b_f


def _pad2(a, rows, cols):
    out = jnp.zeros((rows, cols), a.dtype)
    return out.at[: a.shape[0], : a.shape[1]].set(a)


def make_params(key, num_features, num_targets, hidden_size):
    k1, k2, k3 = jax.random.split(key, 3)
    # Raw (PyTorch-equivalent) params.
    w1_t, b1 = _weight_norm_linear_params(k1, num_features, hidden_size)
    w2_t, b2 = _weight_norm_linear_params(k2, hidden_size, hidden_size)
    w3_t, b3 = _weight_norm_linear_params(k3, hidden_size, num_targets)
    s1, t1 = _bn_affine(num_features)
    s2, t2 = _bn_affine(hidden_size)
    s3, t3 = _bn_affine(hidden_size)

    # Fold eval-mode BatchNorm affines into the matmul weights/biases.
    w1_f, b1_f = _fold_bn(s1, t1, w1_t, b1)
    w2_f, b2_f = _fold_bn(s2, t2, w2_t, b2)
    w3_f, b3_f = _fold_bn(s3, t3, w3_t, b3)

    # Only the HIDDEN dims are lane-padded (zero cols + zero bias are exact:
    # padded hidden units stay 0 through leaky_relu and contribute nothing).
    # Input (F) and output (num_targets) dims stay at their true widths.
    h_pad = _round_up(hidden_size, LANE)

    params = dict(
        w1=_pad2(w1_f, num_features, h_pad).astype(jnp.bfloat16),
        b1=_pad2(b1_f, 1, h_pad),
        w2=_pad2(w2_f, h_pad, h_pad).astype(jnp.bfloat16),
        b2=_pad2(b2_f, 1, h_pad),
        w3=_pad2(w3_f, h_pad, num_targets).astype(jnp.bfloat16),
        b3=b3_f,                                     # [1, num_targets], f32
    )
    # Keep unfolded/unpadded params around for the pure-JAX reference.
    raw = dict(s1=s1, t1=t1, w1_t=w1_t, b1=b1,
               s2=s2, t2=t2, w2_t=w2_t, b2=b2,
               s3=s3, t3=t3, w3_t=w3_t, b3=b3)
    return params, raw


def _reference_forward(x, p):
    """Pure-JAX f32 reference following the original (unfolded) op chain."""
    h = x * p["s1"] + p["t1"]
    h = _leaky_relu(h @ p["w1_t"] + p["b1"])
    h = h * p["s2"] + p["t2"]
    h = _leaky_relu(h @ p["w2_t"] + p["b2"])
    h = h * p["s3"] + p["t3"]
    return h @ p["w3_t"] + p["b3"]


if __name__ == "__main__":
    num_features, num_targets, hidden_size = 16, 8, 32
    batch = 8

    key = jax.random.PRNGKey(0)
    kx, kp = jax.random.split(key)
    x = jax.random.normal(kx, (batch, num_features), jnp.float32)
    params, raw = make_params(kp, num_features, num_targets, hidden_size)

    out = model_old_forward(x, params)
    out = jax.block_until_ready(out)

    ref = _reference_forward(x, raw)
    assert out.shape == (batch, num_targets)
    # Tolerance relaxed vs. the f32 reference because the kernel uses bf16
    # weights/activations into the MXU (f32 accumulation).
    assert jnp.allclose(out, ref, atol=3e-2, rtol=3e-2), "mismatch vs JAX reference"

    print("KERNEL_OK")
</pallas_src>

<mosaic_0001>
module attributes {stable_mosaic.version = 11 : i64} {
  func.func @mlp_kernel(%arg0: i32, %arg1: memref<8x16xf32, #tpu.memory_space<vmem>>, %arg2: memref<16x128xbf16, #tpu.memory_space<vmem>>, %arg3: memref<1x128xf32, #tpu.memory_space<vmem>>, %arg4: memref<128x128xbf16, #tpu.memory_space<vmem>>, %arg5: memref<1x128xf32, #tpu.memory_space<vmem>>, %arg6: memref<128x8xbf16, #tpu.memory_space<vmem>>, %arg7: memref<1x8xf32, #tpu.memory_space<vmem>>, %arg8: memref<8x8xf32, #tpu.memory_space<vmem>>) attributes {dimension_semantics = [#tpu.dimension_semantics<parallel>], iteration_bounds = array<i64: 1>, scalar_prefetch = 0 : i64, scratch_operands = 0 : i64, tpu.core_type = #tpu.core_type<tc>, window_params = [{transform_indices = @transform_0, window_bounds = array<i64: 8, 16>}, {pipeline_mode = #tpu.pipeline_mode<synchronous>, transform_indices = @transform_1, window_bounds = array<i64: 16, 128>}, {pipeline_mode = #tpu.pipeline_mode<synchronous>, transform_indices = @transform_2, window_bounds = array<i64: 1, 128>}, {pipeline_mode = #tpu.pipeline_mode<synchronous>, transform_indices = @transform_3, window_bounds = array<i64: 128, 128>}, {pipeline_mode = #tpu.pipeline_mode<synchronous>, transform_indices = @transform_4, window_bounds = array<i64: 1, 128>}, {pipeline_mode = #tpu.pipeline_mode<synchronous>, transform_indices = @transform_5, window_bounds = array<i64: 128, 8>}, {pipeline_mode = #tpu.pipeline_mode<synchronous>, transform_indices = @transform_6, window_bounds = array<i64: 1, 8>}, {transform_indices = @transform_7, window_bounds = array<i64: 8, 8>}]} {
    %c0 = arith.constant 0 : index
    %c0_0 = arith.constant 0 : index
    %0 = vector.load %arg1[%c0, %c0_0] : memref<8x16xf32, #tpu.memory_space<vmem>>, vector<8x16xf32>
    %1 = arith.truncf %0 : vector<8x16xf32> to vector<8x16xbf16>
    %c0_1 = arith.constant 0 : index
    %c0_2 = arith.constant 0 : index
    %2 = vector.load %arg2[%c0_1, %c0_2] : memref<16x128xbf16, #tpu.memory_space<vmem>>, vector<16x128xbf16>
    %cst = arith.constant dense<0.000000e+00> : vector<8x128xf32>
    %3 = tpu.matmul %1, %2, %cst {dimension_numbers = #tpu.dot_dimension_numbers<[1], [0], [0], [1], [0, 0, 1, 1], [], []>} : vector<8x16xbf16>, vector<16x128xbf16>, vector<8x128xf32> -> vector<8x128xf32>
    %c0_3 = arith.constant 0 : index
    %c0_4 = arith.constant 0 : index
    %4 = vector.load %arg3[%c0_3, %c0_4] : memref<1x128xf32, #tpu.memory_space<vmem>>, vector<1x128xf32>
    %5 = vector.broadcast %4 : vector<1x128xf32> to vector<8x128xf32>
    %6 = arith.addf %3, %5 : vector<8x128xf32>
    %cst_5 = arith.constant 0.000000e+00 : f32
    %7 = vector.broadcast %cst_5 : f32 to vector<8x128xf32>
    %8 = arith.cmpf ogt, %6, %7 : vector<8x128xf32>
    %cst_6 = arith.constant 0.00999999977 : f32
    %9 = vector.broadcast %cst_6 : f32 to vector<8x128xf32>
    %10 = arith.mulf %9, %6 : vector<8x128xf32>
    %11 = arith.select %8, %6, %10 : vector<8x128xi1>, vector<8x128xf32>
    %12 = arith.truncf %11 : vector<8x128xf32> to vector<8x128xbf16>
    %c0_7 = arith.constant 0 : index
    %c0_8 = arith.constant 0 : index
    %13 = vector.load %arg4[%c0_7, %c0_8] : memref<128x128xbf16, #tpu.memory_space<vmem>>, vector<128x128xbf16>
    %cst_9 = arith.constant dense<0.000000e+00> : vector<8x128xf32>
    %14 = tpu.matmul %12, %13, %cst_9 {dimension_numbers = #tpu.dot_dimension_numbers<[1], [0], [0], [1], [0, 0, 1, 1], [], []>} : vector<8x128xbf16>, vector<128x128xbf16>, vector<8x128xf32> -> vector<8x128xf32>
    %c0_10 = arith.constant 0 : index
    %c0_11 = arith.constant 0 : index
    %15 = vector.load %arg5[%c0_10, %c0_11] : memref<1x128xf32, #tpu.memory_space<vmem>>, vector<1x128xf32>
    %16 = vector.broadcast %15 : vector<1x128xf32> to vector<8x128xf32>
    %17 = arith.addf %14, %16 : vector<8x128xf32>
    %cst_12 = arith.constant 0.000000e+00 : f32
    %18 = vector.broadcast %cst_12 : f32 to vector<8x128xf32>
    %19 = arith.cmpf ogt, %17, %18 : vector<8x128xf32>
    %cst_13 = arith.constant 0.00999999977 : f32
    %20 = vector.broadcast %cst_13 : f32 to vector<8x128xf32>
    %21 = arith.mulf %20, %17 : vector<8x128xf32>
    %22 = arith.select %19, %17, %21 : vector<8x128xi1>, vector<8x128xf32>
    %23 = arith.truncf %22 : vector<8x128xf32> to vector<8x128xbf16>
    %c0_14 = arith.constant 0 : index
    %c0_15 = arith.constant 0 : index
    %24 = vector.load %arg6[%c0_14, %c0_15] : memref<128x8xbf16, #tpu.memory_space<vmem>>, vector<128x8xbf16>
    %cst_16 = arith.constant dense<0.000000e+00> : vector<8x8xf32>
    %25 = tpu.matmul %23, %24, %cst_16 {dimension_numbers = #tpu.dot_dimension_numbers<[1], [0], [0], [1], [0, 0, 1, 1], [], []>} : vector<8x128xbf16>, vector<128x8xbf16>, vector<8x8xf32> -> vector<8x8xf32>
    %c0_17 = arith.constant 0 : index
    %c0_18 = arith.constant 0 : index
    %26 = vector.load %arg7[%c0_17, %c0_18] : memref<1x8xf32, #tpu.memory_space<vmem>>, vector<1x8xf32>
    %27 = vector.broadcast %26 : vector<1x8xf32> to vector<8x8xf32>
    %28 = arith.addf %25, %27 : vector<8x8xf32>
    %c0_19 = arith.constant 0 : index
    %c0_20 = arith.constant 0 : index
    %29 = vector.load %arg8[%c0_19, %c0_20] : memref<8x8xf32, #tpu.memory_space<vmem>>, vector<8x8xf32>
    tpu.vector_store %arg8[%c0_19, %c0_20], %28 {strides = array<i32>} : memref<8x8xf32, #tpu.memory_space<vmem>>, vector<8x8xf32>,
    return
  }
  func.func @transform_0(%arg0: i32) -> (i32, i32) {
    %c0_i32 = arith.constant 0 : i32
    %c0_i32_0 = arith.constant 0 : i32
    return %arg0, %c0_i32 : i32, i32
  }
  func.func @transform_1(%arg0: i32) -> (i32, i32) {
    %c0_i32 = arith.constant 0 : i32
    %c0_i32_0 = arith.constant 0 : i32
    %c0_i32_1 = arith.constant 0 : i32
    return %c0_i32, %c0_i32_0 : i32, i32
  }
  func.func @transform_2(%arg0: i32) -> (i32, i32) {
    %c0_i32 = arith.constant 0 : i32
    %c0_i32_0 = arith.constant 0 : i32
    %c0_i32_1 = arith.constant 0 : i32
    return %c0_i32, %c0_i32_0 : i32, i32
  }
  func.func @transform_3(%arg0: i32) -> (i32, i32) {
    %c0_i32 = arith.constant 0 : i32
    %c0_i32_0 = arith.constant 0 : i32
    %c0_i32_1 = arith.constant 0 : i32
    return %c0_i32, %c0_i32_0 : i32, i32
  }
  func.func @transform_4(%arg0: i32) -> (i32, i32) {
    %c0_i32 = arith.constant 0 : i32
    %c0_i32_0 = arith.constant 0 : i32
    %c0_i32_1 = arith.constant 0 : i32
    return %c0_i32, %c0_i32_0 : i32, i32
  }
  func.func @transform_5(%arg0: i32) -> (i32, i32) {
    %c0_i32 = arith.constant 0 : i32
    %c0_i32_0 = arith.constant 0 : i32
    %c0_i32_1 = arith.constant 0 : i32
    return %c0_i32, %c0_i32_0 : i32, i32
  }
  func.func @transform_6(%arg0: i32) -> (i32, i32) {
    %c0_i32 = arith.constant 0 : i32
    %c0_i32_0 = arith.constant 0 : i32
    %c0_i32_1 = arith.constant 0 : i32
    return %c0_i32, %c0_i32_0 : i32, i32
  }
  func.func @transform_7(%arg0: i32) -> (i32, i32) {
    %c0_i32 = arith.constant 0 : i32
    %c0_i32_0 = arith.constant 0 : i32
    return %arg0, %c0_i32 : i32, i32
  }
}

</mosaic_0001>

<llo_original>
// kernel: tpu_custom_call.1
$region0: #{tpu_custom_call.1}
  #allocation0 [shape = 'u32[]', space=smem, size = 0x4, offset = 0x4, fixed_abs, tag = 'smem constant byte address 0x4 - core index']
  #allocation1 [shape = 'u32[72,128]{1,0:T(1,128)}', space=vmem, size = 0x9000, scoped, tag = 'internal scratch']
  %s0 = inlined_call_operand.hbm [shape: f32[8,16], index: 0, kind: input, shape index: {}]
  %s1 = inlined_call_operand.hbm [shape: bf16[16,128], index: 1, kind: input, shape index: {}]
  %s2 = inlined_call_operand.vmem [shape: f32[1,128], index: 2, kind: input, shape index: {}]
  %s3 = inlined_call_operand.vmem [shape: bf16[128,128], index: 3, kind: input, shape index: {}]
  %s4 = inlined_call_operand.vmem [shape: f32[1,128], index: 4, kind: input, shape index: {}]
  %s5 = inlined_call_operand.vmem [shape: bf16[128,8], index: 5, kind: input, shape index: {}]
  %s6 = inlined_call_operand.vmem [shape: f32[1,8], index: 6, kind: input, shape index: {}]
  %s7 = inlined_call_operand.hbm [shape: f32[8,8], index: 7, kind: output, shape index: {}]
  %s8 = sld [smem:[#allocation0]]
  $region46: #{tpu_custom_call.1} parent=0
    _
  %s10 = ssub.s32 1, %s8
  %s11 = scalar_select 0, %s10, %s8
  $region1: #{tpu_custom_call.1} parent=0
    #allocation2 [shape = 'u8[4096]{0}', space=vmem, size = 0x1000, scoped, tag = 'input window, operand 0, single buffered']
    #allocation3 [shape = 's32[1]{0}', space=sflag, size = 0x4, scoped, tag = 'scoped memory for tpu_custom_call.1']
    #allocation4 [shape = 's32[1]{0}', space=sflag, size = 0x4, scoped, tag = 'scoped memory for tpu_custom_call.1']
    #allocation5 [shape = 'u8[4096]{0}', space=vmem, size = 0x1000, scoped, tag = 'input window, operand 1, single buffered']
    #allocation6 [shape = 's32[1]{0}', space=sflag, size = 0x4, scoped, tag = 'scoped memory for tpu_custom_call.1']
    #allocation7 [shape = 'u8[4096]{0}', space=vmem, size = 0x1000, scoped, tag = 'output window, operand 0, single buffered']
    %12 = vsyncpa [#allocation3], 0
    %13 = vsyncpa [#allocation6], 0
    %14 = vsyncpa [#allocation4], 0
    // Predicated region
    $region2: #{tpu_custom_call.1} parent=1 // pred_check
      _
    $region3: #{tpu_custom_call.1} parent=1 // pred_check_branch
      %16 = sbr.rel (0) target = $region5
    $region4: #{tpu_custom_call.1} parent=1 // pred_region
      %18 = vsyncadd [#allocation3], 0
      %s20 = sshll.u32 %s0, 4
      %s21 = int_to_ptr.hbm [resolvable:$true] %s20
      %s22 = sshll.u32 [#allocation2], 4
      %s23 = int_to_ptr.vmem [resolvable:$true] %s22
      %25 = dma.hbm_to_vmem [thread:$0]  %s21, 128, %s23, [#allocation3]
    $region5: #{tpu_custom_call.1} parent=1 // pred_fallthru
      _
    // Predicated region
    $region6: #{tpu_custom_call.1} parent=1 // pred_check
      _
    $region7: #{tpu_custom_call.1} parent=1 // pred_check_branch
      %27 = sbr.rel (0) target = $region9
    $region8: #{tpu_custom_call.1} parent=1 // pred_region
      %29 = vsyncadd [#allocation6], 0
      %s30 = sshll.u32 %s1, 4
      %s31 = int_to_ptr.hbm [resolvable:$true] %s30
      %s32 = sshll.u32 [#allocation5], 4
      %s33 = int_to_ptr.vmem [resolvable:$true] %s32
      %38 = dma.hbm_to_vmem [thread:$0]  %s31, 128, %s33, [#allocation6], 64, 64, 4
    $region9: #{tpu_custom_call.1} parent=1 // pred_fallthru
      _
    // Predicated region
    $region10: #{tpu_custom_call.1} parent=1 // pred_check
      _
    $region11: #{tpu_custom_call.1} parent=1 // pred_check_branch
      %40 = sbr.rel (0) target = $region13
    $region12: #{tpu_custom_call.1} parent=1 // pred_region
      _
    $region13: #{tpu_custom_call.1} parent=1 // pred_fallthru
      _
    // Predicated region
    $region14: #{tpu_custom_call.1} parent=1 // pred_check
      _
    $region15: #{tpu_custom_call.1} parent=1 // pred_check_branch
      %42 = sbr.rel (0) target = $region17
    $region16: #{tpu_custom_call.1} parent=1 // pred_region
      _
    $region17: #{tpu_custom_call.1} parent=1 // pred_fallthru
      _
    // Predicated region
    $region18: #{tpu_custom_call.1} parent=1 // pred_check
      _
    $region19: #{tpu_custom_call.1} parent=1 // pred_check_branch
      %44 = sbr.rel (0) target = $region21
    $region20: #{tpu_custom_call.1} parent=1 // pred_region
      _
    $region21: #{tpu_custom_call.1} parent=1 // pred_fallthru
      _
    // Predicated region
    $region22: #{tpu_custom_call.1} parent=1 // pred_check
      _
    $region23: #{tpu_custom_call.1} parent=1 // pred_check_branch
      %46 = sbr.rel (0) target = $region25
    $region24: #{tpu_custom_call.1} parent=1 // pred_region
      _
    $region25: #{tpu_custom_call.1} parent=1 // pred_fallthru
      _
    // Predicated region
    $region26: #{tpu_custom_call.1} parent=1 // pred_check
      _
    $region27: #{tpu_custom_call.1} parent=1 // pred_check_branch
      %48 = sbr.rel (0) target = $region29
    $region28: #{tpu_custom_call.1} parent=1 // pred_region
      _
    $region29: #{tpu_custom_call.1} parent=1 // pred_fallthru
      _
    // Predicated region
    $region30: #{tpu_custom_call.1} parent=1 // pred_check
      _
    $region31: #{tpu_custom_call.1} parent=1 // pred_check_branch
      %50 = sbr.rel (0) target = $region33
    $region32: #{tpu_custom_call.1} parent=1 // pred_region
      %52 = dma.done [#allocation3], 128
    $region33: #{tpu_custom_call.1} parent=1 // pred_fallthru
      _
    // Predicated region
    $region34: #{tpu_custom_call.1} parent=1 // pred_check
      _
    $region35: #{tpu_custom_call.1} parent=1 // pred_check_branch
      %54 = sbr.rel (0) target = $region37
    $region36: #{tpu_custom_call.1} parent=1 // pred_region
      %56 = dma.done [#allocation6], 128
    $region37: #{tpu_custom_call.1} parent=1 // pred_fallthru
      _
    %v58 = vld [vmem:[#allocation2] sm:$0xff]
    %v59 = vpack.c.bf16 %v58, %v58
    %v60 = vld [vmem:[#allocation5] sm:$0xf]
    %v61 = vld [vmem:[#allocation5 + $0x4] sm:$0xf]
    %v62 = vld [vmem:[%s2] sm:$0x1]
    %v64 = vperm.slane %v62, 0
    %v68 = vunpack.c.l.b16 %v60
    %v69 = vunpack.c.l.b16 %v61
    %v70 = vpack.c.b16 %v69, %v68
    %vm72 = vcmask 130048
    %v74 = vsel %vm72, %v59, 0
    %76 = vmatpush.bf16.msra.mxu0 0
    %77 = vmatpush.bf16.msra.mxu0 0
    %78 = vmatpush.bf16.msra.mxu0 0
    %79 = vmatpush.bf16.msra.mxu0 0
    %80 = vmatpush.bf16.msra.mxu0 0
    %81 = vmatpush.bf16.msra.mxu0 0
    %82 = vmatpush.bf16.msra.mxu0 0
    %83 = vmatpush.bf16.msra.mxu0 %v70
    %84 = vmatmul.bf16.gmra.mxu0 %v74
    %v85 = vpop.f32.mrf.mxu0
    %v86 = vadd.f32 %v64, %v85
    %v87 = vpop.f32.mrf.mxu0
    %88 = vdwg.mxu0
    %vm89 = vcmp.gt.f32.partialorder %v86, 0.0
    %v90 = vmul.f32 %v86, 0.01
    %v91 = vsel %vm89, %v86, %v90
    %v92 = vpack.c.bf16 %v91, %v91
    %v93 = vld [vmem:[%s3] sm:$0xf]
    %v94 = vld [vmem:[%s3 + $0x4] sm:$0xf]
    %v95 = vld [vmem:[%s3 + $0x8] sm:$0xf]
    %v96 = vld [vmem:[%s3 + $0xc] sm:$0xf]
    %v97 = vld [vmem:[%s3 + $0x10] sm:$0xf]
    %v98 = vld [vmem:[%s3 + $0x14] sm:$0xf]
    %v99 = vld [vmem:[%s3 + $0x18] sm:$0xf]
    %v100 = vld [vmem:[%s3 + $0x1c] sm:$0xf]
    %v101 = vld [vmem:[%s3 + $0x20] sm:$0xf]
    %v102 = vld [vmem:[%s3 + $0x24] sm:$0xf]
    %v103 = vld [vmem:[%s3 + $0x28] sm:$0xf]
    %v104 = vld [vmem:[%s3 + $0x2c] sm:$0xf]
    %v105 = vld [vmem:[%s3 + $0x30] sm:$0xf]
    %v106 = vld [vmem:[%s3 + $0x34] sm:$0xf]
    %v107 = vld [vmem:[%s3 + $0x38] sm:$0xf]
    %v108 = vld [vmem:[%s3 + $0x3c] sm:$0xf]
    %v109 = vld [vmem:[%s4] sm:$0x1]
    %v111 = vperm.slane %v109, 0
    %v129 = vunpack.c.l.b16 %v93
    %v130 = vunpack.c.l.b16 %v94
    %v131 = vunpack.c.l.b16 %v95
    %v132 = vunpack.c.l.b16 %v96
    %v133 = vunpack.c.l.b16 %v97
    %v134 = vunpack.c.l.b16 %v98
    %v135 = vunpack.c.l.b16 %v99
    %v136 = vunpack.c.l.b16 %v100
    %v137 = vunpack.c.l.b16 %v101
    %v138 = vunpack.c.l.b16 %v102
    %v139 = vunpack.c.l.b16 %v103
    %v140 = vunpack.c.l.b16 %v104
    %v141 = vunpack.c.l.b16 %v105
    %v142 = vunpack.c.l.b16 %v106
    %v143 = vunpack.c.l.b16 %v107
    %v144 = vunpack.c.l.b16 %v108
    %v145 = vpack.c.b16 %v130, %v129
    %v146 = vpack.c.b16 %v132, %v131
    %v147 = vpack.c.b16 %v134, %v133
    %v148 = vpack.c.b16 %v136, %v135
    %v149 = vpack.c.b16 %v138, %v137
    %v150 = vpack.c.b16 %v140, %v139
    %v151 = vpack.c.b16 %v142, %v141
    %v152 = vpack.c.b16 %v144, %v143
    %161 = vmatpush.bf16.msra.mxu0 %v152
    %162 = vmatpush.bf16.msra.mxu0 %v151
    %163 = vmatpush.bf16.msra.mxu0 %v150
    %164 = vmatpush.bf16.msra.mxu0 %v149
    %165 = vmatpush.bf16.msra.mxu0 %v148
    %166 = vmatpush.bf16.msra.mxu0 %v147
    %167 = vmatpush.bf16.msra.mxu0 %v146
    %168 = vmatpush.bf16.msra.mxu0 %v145
    %169 = vmatmul.bf16.gmra.mxu0 %v92
    %v170 = vpop.f32.mrf.mxu0
    %v171 = vadd.f32 %v111, %v170
    %v172 = vpop.f32.mrf.mxu0
    %173 = vdwg.mxu0
    %vm174 = vcmp.gt.f32.partialorder %v171, 0.0
    %v175 = vmul.f32 %v171, 0.01
    %v176 = vsel %vm174, %v171, %v175
    %v177 = vpack.c.bf16 %v176, %v176
    %v178 = vld [vmem:[%s5] sm:$0xf]
    %v179 = vld [vmem:[%s5 + $0x4] sm:$0xf]
    %v180 = vld [vmem:[%s5 + $0x8] sm:$0xf]
    %v181 = vld [vmem:[%s5 + $0xc] sm:$0xf]
    %v182 = vld [vmem:[%s5 + $0x10] sm:$0xf]
    %v183 = vld [vmem:[%s5 + $0x14] sm:$0xf]
    %v184 = vld [vmem:[%s5 + $0x18] sm:$0xf]
    %v185 = vld [vmem:[%s5 + $0x1c] sm:$0xf]
    %v186 = vld [vmem:[%s5 + $0x20] sm:$0xf]
    %v187 = vld [vmem:[%s5 + $0x24] sm:$0xf]
    %v188 = vld [vmem:[%s5 + $0x28] sm:$0xf]
    %v189 = vld [vmem:[%s5 + $0x2c] sm:$0xf]
    %v190 = vld [vmem:[%s5 + $0x30] sm:$0xf]
    %v191 = vld [vmem:[%s5 + $0x34] sm:$0xf]
    %v192 = vld [vmem:[%s5 + $0x38] sm:$0xf]
    %v193 = vld [vmem:[%s5 + $0x3c] sm:$0xf]
    %v194 = vld [vmem:[%s6] sm:$0x1]
    %v196 = vperm.slane %v194, 0
    %v214 = vunpack.c.l.b16 %v178
    %v215 = vunpack.c.l.b16 %v179
    %v216 = vunpack.c.l.b16 %v180
    %v217 = vunpack.c.l.b16 %v181
    %v218 = vunpack.c.l.b16 %v182
    %v219 = vunpack.c.l.b16 %v183
    %v220 = vunpack.c.l.b16 %v184
    %v221 = vunpack.c.l.b16 %v185
    %v222 = vunpack.c.l.b16 %v186
    %v223 = vunpack.c.l.b16 %v187
    %v224 = vunpack.c.l.b16 %v188
    %v225 = vunpack.c.l.b16 %v189
    %v226 = vunpack.c.l.b16 %v190
    %v227 = vunpack.c.l.b16 %v191
    %v228 = vunpack.c.l.b16 %v192
    %v229 = vunpack.c.l.b16 %v193
    %v230 = vpack.c.b16 %v215, %v214
    %v231 = vpack.c.b16 %v217, %v216
    %v232 = vpack.c.b16 %v219, %v218
    %v233 = vpack.c.b16 %v221, %v220
    %v234 = vpack.c.b16 %v223, %v222
    %v235 = vpack.c.b16 %v225, %v224
    %v236 = vpack.c.b16 %v227, %v226
    %v237 = vpack.c.b16 %v229, %v228
    %246 = vmatpush.bf16.msra.mxu0 %v237
    %247 = vmatpush.bf16.msra.mxu0 %v236
    %248 = vmatpush.bf16.msra.mxu0 %v235
    %249 = vmatpush.bf16.msra.mxu0 %v234
    %250 = vmatpush.bf16.msra.mxu0 %v233
    %251 = vmatpush.bf16.msra.mxu0 %v232
    %252 = vmatpush.bf16.msra.mxu0 %v231
    %253 = vmatpush.bf16.msra.mxu0 %v230
    %254 = vmatmul.bf16.gmra.mxu0 %v177
    %v255 = vpop.f32.mrf.mxu0
    %v256 = vadd.f32 %v196, %v255
    %v257 = vpop.f32.mrf.mxu0
    %258 = vdwg.mxu0
    %vm259 = vcmask 64512
    %260 = vst.msk [vmem:[#allocation7] sm:$0xff] %vm259, %v256
    // Predicated region
    $region38: #{tpu_custom_call.1} parent=1 // pred_check
      _
    $region39: #{tpu_custom_call.1} parent=1 // pred_check_branch
      %262 = sbr.rel (0) target = $region41
    $region40: #{tpu_custom_call.1} parent=1 // pred_region
      %264 = vsyncadd [#allocation4], 0
      %s266 = sshll.u32 [#allocation7], 4
      %s267 = int_to_ptr.vmem [resolvable:$true] %s266
      %s268 = sshll.u32 %s7, 4
      %s269 = int_to_ptr.hbm [resolvable:$true] %s268
      %271 = dma.vmem_to_hbm [thread:$0]  %s267, 128, %s269, [#allocation4]
    $region41: #{tpu_custom_call.1} parent=1 // pred_fallthru
      _
    // Predicated region
    $region42: #{tpu_custom_call.1} parent=1 // pred_check
      _
    $region43: #{tpu_custom_call.1} parent=1 // pred_check_branch
      %273 = sbr.rel (0) target = $region45
    $region44: #{tpu_custom_call.1} parent=1 // pred_region
      %275 = dma.done [#allocation4], 128
    $region45: #{tpu_custom_call.1} parent=1 // pred_fallthru
      _
    %276 = vsyncpa [#allocation3], 1
    %277 = vsyncpa [#allocation6], 1
    %278 = vsyncpa [#allocation4], 1

</llo_original>
